<compile_context>
chip_gen: v6e
topology: v6e:2x2x1
jax: 0.10.0
libtpu: 0.0.40
codegen_flags: <defaults>
</compile_context>

<pallas_src>
import jax
import jax.numpy as jnp
from jax.experimental import pallas as pl
from jax.experimental.pallas import tpu as pltpu

JITTER_SIGMA = 0.03      # standard InfoTS jitter sigma
NUM_AUGS = 4             # [jitter, TimeReverse, TimeShift, SignFlip]


def infots_aug_kernel(cn_ref, m_ref, x_ref, z_ref, aug1_ref):
    # cn_ref:   SMEM (1,) f32      = w0 * sigma (jitter-noise coefficient)
    # m_ref:    VMEM (T, T)        = fused time-mixing matrix (resident, fetched once)
    # x_ref:    VMEM (TB, T, C)
    # z_ref:    VMEM (TB, T, C)    = standard-normal jitter noise
    # aug1_ref: VMEM (TB, T, C)
    tb = x_ref.shape[0]
    c_n = cn_ref[0]
    m = m_ref[...]

    def body(b, carry):
        xb = x_ref[b]                                   # (T, C), native dtype
        # One matmul does identity + sign-flip + reverse + shift at once; f32 acc.
        mixed = jnp.dot(m, xb,
                        preferred_element_type=jnp.float32,
                        precision=jax.lax.Precision.HIGHEST)
        aug1_ref[b] = (mixed + c_n * z_ref[b]).astype(aug1_ref.dtype)
        return carry

    # Small per-step trip count -> unroll; larger TB falls back to a rolled loop.
    jax.lax.fori_loop(0, tb, body, 0, unroll=tb <= 8)


def _pick_batch_block(batch, bytes_per_batch_row, target_bytes=2 << 20, min_steps=4):
    """Batch tile: ~2 MiB per x tile (v7x-safe with double-buffered x/z/out), while
    aiming for >= min_steps grid steps (>= 2 per v7x TensorCore).  No divisor
    constraint -- the wrapper pads B with a cdiv grid instead."""
    cap = max(1, target_bytes // max(1, bytes_per_batch_row))
    want = max(1, -(-batch // min_steps))        # ceil(batch / min_steps)
    return max(1, min(cap, want, batch))


def infots_aug_forward(x, weight, noise_key, aug_p1=0.2, aug_p2=0.0):
    """Eval-mode InfoTSAUG forward.

    x:         (B, T, C) float
    weight:    (2, NUM_AUGS) float (module parameter)
    noise_key: JAX PRNG key for the jitter noise (tiling-independent realization)
    Returns (aug1, aug2) with aug2 == x (the module's x.clone()).
    """
    B, T, C = x.shape
    if aug_p1 == 0 and aug_p2 == 0:
        return x, x

    # eval-mode sampling: softmax over the augmentation axis, row 0.
    para0 = jax.nn.softmax(weight.astype(jnp.float32), axis=-1)[0]        # (4,)

    # Fused time-mixing matrix, built once on the host (O(T^2), tiny):
    #   M @ x_b == w0*x + w1*reverse_T(x) + w2*roll_T(x, T//2) + w3*(-x)
    eye = jnp.eye(T, dtype=jnp.float32)
    m_rev = eye[::-1]                        # TimeReverse permutation (anti-identity)
    m_shf = jnp.roll(eye, T // 2, axis=0)    # TimeShift permutation (circular, T//2)
    m_mat = ((para0[0] - para0[3]) * eye + para0[1] * m_rev + para0[2] * m_shf)
    m_mat = m_mat.astype(x.dtype)            # feed MXU at the native dtype (no in-kernel cast)

    cn = jnp.reshape(para0[0] * JITTER_SIGMA, (1,)).astype(jnp.float32)   # w0 * sigma

    # Standard-normal jitter noise (the jitter aug applies noise in eval mode too).
    z = jax.random.normal(noise_key, x.shape, dtype=x.dtype)

    TB = _pick_batch_block(B, T * C * x.dtype.itemsize)
    n_steps = -(-B // TB)                    # cdiv grid
    Bp = n_steps * TB
    if Bp != B:
        pad = ((0, Bp - B), (0, 0), (0, 0))  # zero-pad last step; sliced off below
        x_in = jnp.pad(x, pad)
        z_in = jnp.pad(z, pad)
    else:
        x_in, z_in = x, z

    grid_spec = pl.GridSpec(
        grid=(n_steps,),
        in_specs=[
            pl.BlockSpec(memory_space=pltpu.MemorySpace.SMEM),        # cn scalar
            pl.BlockSpec((T, T), lambda b: (0, 0)),                   # M (VMEM-resident)
            pl.BlockSpec((TB, T, C), lambda b: (b, 0, 0)),            # x tile
            pl.BlockSpec((TB, T, C), lambda b: (b, 0, 0)),            # z tile
        ],
        out_specs=pl.BlockSpec((TB, T, C), lambda b: (b, 0, 0)),      # aug1 tile
    )

    aug1 = pl.pallas_call(
        infots_aug_kernel,
        out_shape=jax.ShapeDtypeStruct((Bp, T, C), x.dtype),
        grid_spec=grid_spec,
        compiler_params=pltpu.CompilerParams(
            dimension_semantics=("parallel",),
            # ~2 MiB tiles * 3 streams * 2 buffers + small temps << 32 MiB;
            # safe on v7x (64 MiB physical); raise freely on v5e/v6e if tiles grow.
            vmem_limit_bytes=32 * 1024 * 1024,
        ),
    )(cn, m_mat, x_in, z_in)

    if Bp != B:
        aug1 = aug1[:B]

    # aug2 = x.clone(): JAX arrays are immutable, so returning x is equivalent and
    # avoids a redundant full HBM output stream.
    return aug1, x


if __name__ == "__main__":
    key = jax.random.PRNGKey(0)
    B, T, C = 2, 16, 128
    kx, kw, kz = jax.random.split(key, 3)

    x = jax.random.normal(kx, (B, T, C), dtype=jnp.float32)
    # Parameter init mirrors torch.nn.init.normal_(weight, 0.0, 0.01), shape (2, NUM_AUGS)
    weight = 0.01 * jax.random.normal(kw, (2, NUM_AUGS), dtype=jnp.float32)

    aug1, aug2 = infots_aug_forward(x, weight, kz, aug_p1=0.2, aug_p2=0.0)
    jax.block_until_ready((aug1, aug2))

    # Pure-JAX reference of the full eval-mode forward (noise uses the same key,
    # so the comparison is direct -- no statistical test needed).
    para0 = jax.nn.softmax(weight.astype(jnp.float32), axis=-1)[0]
    z = jax.random.normal(kz, x.shape, dtype=jnp.float32)
    ref = (para0[0] * (x + JITTER_SIGMA * z)
           + para0[1] * x[:, ::-1, :]
           + para0[2] * jnp.roll(x, T // 2, axis=1)
           + para0[3] * (-x))

    assert aug1.shape == x.shape and aug1.dtype == x.dtype, "shape/dtype mismatch"
    assert bool(jnp.all(jnp.isfinite(aug1))), "non-finite output"
    # 5e-3 absolute tolerance: loose enough for MXU f32 accumulation, tight enough
    # to catch a wrong permutation (~0.3) or a dropped noise term (~0.02).
    assert bool(jnp.allclose(aug1, ref, atol=5e-3, rtol=0.0)), "aug1 mismatch vs reference"
    assert bool(jnp.array_equal(aug2, x)), "aug2 mismatch"
    print("KERNEL_OK")
</pallas_src>

<mosaic_0001>
module attributes {stable_mosaic.version = 11 : i64} {
  func.func @infots_aug_kernel(%arg0: i32, %arg1: memref<1xf32, #tpu.memory_space<smem>>, %arg2: memref<16x16xf32, #tpu.memory_space<vmem>>, %arg3: memref<1x16x128xf32, #tpu.memory_space<vmem>>, %arg4: memref<1x16x128xf32, #tpu.memory_space<vmem>>, %arg5: memref<1x16x128xf32, #tpu.memory_space<vmem>>) attributes {dimension_semantics = [#tpu.dimension_semantics<parallel>], iteration_bounds = array<i64: 2>, scalar_prefetch = 0 : i64, scratch_operands = 0 : i64, tpu.core_type = #tpu.core_type<tc>, window_params = [{transform_indices = @transform_0, window_bounds = array<i64: 1>}, {pipeline_mode = #tpu.pipeline_mode<synchronous>, transform_indices = @transform_1, window_bounds = array<i64: 16, 16>}, {transform_indices = @transform_2, window_bounds = array<i64: 1, 16, 128>}, {transform_indices = @transform_3, window_bounds = array<i64: 1, 16, 128>}, {transform_indices = @transform_4, window_bounds = array<i64: 1, 16, 128>}]} {
    %c0 = arith.constant 0 : index
    %0 = memref.load %arg1[%c0] : memref<1xf32, #tpu.memory_space<smem>>
    %c0_0 = arith.constant 0 : index
    %c0_1 = arith.constant 0 : index
    %1 = vector.load %arg2[%c0_0, %c0_1] : memref<16x16xf32, #tpu.memory_space<vmem>>, vector<16x16xf32>
    %c0_i32 = arith.constant 0 : i32
    %2 = arith.index_cast %c0_i32 : i32 to index
    %c0_2 = arith.constant 0 : index
    %c0_3 = arith.constant 0 : index
    %3 = vector.load %arg3[%2, %c0_2, %c0_3] : memref<1x16x128xf32, #tpu.memory_space<vmem>>, vector<1x16x128xf32>
    %4 = vector.shape_cast %3 : vector<1x16x128xf32> to vector<16x128xf32>
    %cst = arith.constant dense<0.000000e+00> : vector<16x128xf32>
    %5 = tpu.matmul %1, %4, %cst {dimension_numbers = #tpu.dot_dimension_numbers<[1], [0], [0], [1], [0, 0, 1, 1], [], []>, precision = #tpu.contract_precision<fp32>} : vector<16x16xf32>, vector<16x128xf32>, vector<16x128xf32> -> vector<16x128xf32>
    %6 = arith.index_cast %c0_i32 : i32 to index
    %c0_4 = arith.constant 0 : index
    %c0_5 = arith.constant 0 : index
    %7 = vector.load %arg4[%6, %c0_4, %c0_5] : memref<1x16x128xf32, #tpu.memory_space<vmem>>, vector<1x16x128xf32>
    %8 = vector.shape_cast %7 : vector<1x16x128xf32> to vector<16x128xf32>
    %9 = vector.broadcast %0 : f32 to vector<16x128xf32>
    %10 = arith.mulf %9, %8 : vector<16x128xf32>
    %11 = arith.addf %5, %10 : vector<16x128xf32>
    %12 = arith.index_cast %c0_i32 : i32 to index
    %c0_6 = arith.constant 0 : index
    %c0_7 = arith.constant 0 : index
    %13 = vector.load %arg5[%12, %c0_6, %c0_7] : memref<1x16x128xf32, #tpu.memory_space<vmem>>, vector<1x16x128xf32>
    %14 = vector.shape_cast %13 : vector<1x16x128xf32> to vector<16x128xf32>
    %15 = vector.shape_cast %11 : vector<16x128xf32> to vector<1x16x128xf32>
    tpu.vector_store %arg5[%12, %c0_6, %c0_7], %15 {strides = array<i32>} : memref<1x16x128xf32, #tpu.memory_space<vmem>>, vector<1x16x128xf32>,
    %c1_i32 = arith.constant 1 : i32
    return
  }
  func.func @transform_0(%arg0: i32) -> i32 {
    %c0_i32 = arith.constant 0 : i32
    %c0_i32_0 = arith.constant 0 : i32
    return %c0_i32 : i32
  }
  func.func @transform_1(%arg0: i32) -> (i32, i32) {
    %c0_i32 = arith.constant 0 : i32
    %c0_i32_0 = arith.constant 0 : i32
    %c0_i32_1 = arith.constant 0 : i32
    return %c0_i32, %c0_i32_0 : i32, i32
  }
  func.func @transform_2(%arg0: i32) -> (i32, i32, i32) {
    %c0_i32 = arith.constant 0 : i32
    %c0_i32_0 = arith.constant 0 : i32
    %c0_i32_1 = arith.constant 0 : i32
    return %arg0, %c0_i32, %c0_i32_0 : i32, i32, i32
  }
  func.func @transform_3(%arg0: i32) -> (i32, i32, i32) {
    %c0_i32 = arith.constant 0 : i32
    %c0_i32_0 = arith.constant 0 : i32
    %c0_i32_1 = arith.constant 0 : i32
    return %arg0, %c0_i32, %c0_i32_0 : i32, i32, i32
  }
  func.func @transform_4(%arg0: i32) -> (i32, i32, i32) {
    %c0_i32 = arith.constant 0 : i32
    %c0_i32_0 = arith.constant 0 : i32
    %c0_i32_1 = arith.constant 0 : i32
    return %arg0, %c0_i32, %c0_i32_0 : i32, i32, i32
  }
}

</mosaic_0001>

<llo_original>
// kernel: tpu_custom_call.1
$region0: #{tpu_custom_call.1}
  #allocation0 [shape = 'u32[]', space=smem, size = 0x4, offset = 0x4, fixed_abs, tag = 'smem constant byte address 0x4 - core index']
  #allocation1 [shape = 'u32[144,128]{1,0:T(1,128)}', space=vmem, size = 0x12000, scoped, tag = 'internal scratch']
  #allocation2 [shape = 'f32[1]{0:T(128)S(6)}', space=smem, size = 0x200, scoped, tag = 'scoped memory for tpu_custom_call.1']
  %s0 = inlined_call_operand.<no memory space> [shape: f32[1], index: 0, kind: input, shape index: {}]
  %s1 = inlined_call_operand.hbm [shape: f32[16,16], index: 1, kind: input, shape index: {}]
  %s2 = inlined_call_operand.hbm [shape: f32[2,16,128], index: 2, kind: input, shape index: {}]
  %s3 = inlined_call_operand.hbm [shape: f32[2,16,128], index: 3, kind: input, shape index: {}]
  %s4 = inlined_call_operand.hbm [shape: f32[2,16,128], index: 4, kind: output, shape index: {}]
  %s5 = sld [smem:[#allocation0]]
  $region61: #{tpu_custom_call.1} parent=0
    _
  %s7 = ssub.s32 1, %s5
  %s8 = scalar_select 0, %s7, %s5
  %9 = sst [smem:[#allocation2]] %s0
  $region1: #{tpu_custom_call.1} parent=0
    #allocation3 [shape = 'u8[8192]{0}', space=vmem, size = 0x2000, scoped, tag = 'input window, operand 1, single buffered']
    #allocation4 [shape = 's32[2]{0}', space=sflag, size = 0x8, scoped, tag = 'scoped memory for tpu_custom_call.1']
    #allocation5 [shape = 's32[2]{0}', space=sflag, size = 0x8, scoped, tag = 'scoped memory for tpu_custom_call.1']
    #allocation6 [shape = 'u8[16384]{0}', space=vmem, size = 0x4000, scoped, tag = 'input window, operand 2']
    #allocation7 [shape = 's32[2]{0}', space=sflag, size = 0x8, scoped, tag = 'scoped memory for tpu_custom_call.1']
    #allocation8 [shape = 'u8[16384]{0}', space=vmem, size = 0x4000, scoped, tag = 'input window, operand 3']
    #allocation9 [shape = 'u8[16384]{0}', space=vmem, size = 0x4000, scoped, tag = 'output window, operand 0']
    %10 = vsyncpa [#allocation4], 0
    %11 = vsyncpa [#allocation7], 0
    %s12 = scalar_lea.sflag [#allocation7], 1
    %13 = vsyncpa %s12, 0
    %14 = vsyncpa [#allocation5], 0
    %s15 = scalar_lea.sflag [#allocation5], 1
    %16 = vsyncpa %s15, 0
    loop: start=0, step=1, limit=4
    $region2: #{tpu_custom_call.1} parent=1 // loop_pre_header
      _
    $region3: #{tpu_custom_call.1} parent=1 // loop_header
      %s18 = sphi 0, %s22
      %p19 = scmp.ge.s32.totalorder %s18, 4
      %s26 = sphi 0, %s26
      %s28 = sphi 0, %s26
      %s29 = sphi 0, %s28
      %s43 = sphi 0, %s29
      %s47 = sphi 0, %s47
      %s49 = sphi 0, %s47
      %s50 = sphi 0, %s49
      %s64 = sphi 0, %s50
      %s70 = sphi 0, %s72
      %s73 = sphi 0, %s70
      %s74 = sphi 0, %s73
      %s90 = sphi 0, %s74
      %s96 = sphi 0, %s98
      %s99 = sphi 0, %s96
      %s100 = sphi 0, %s99
      %s116 = sphi 0, %s100
      %s122 = sphi 0, %s124
      %s125 = sphi 0, %s122
      %s126 = sphi 0, %s125
      %s142 = sphi 0, %s126
    $region4: #{tpu_custom_call.1} parent=1 // loop_header_branch
      %21 = sbr.rel (%p19) target = $region8
    $region5: #{tpu_custom_call.1} parent=1 // loop_body
      %s23 = ssub.s32 %s18, 1
      %s24 = ssub.s32 %s18, 2
      %s25 = sadd.s32 %s18, 1
      %s27 = sadd.s32 %s26, 1
      %p30 = scmp.eq.s32.totalorder %s18, 1
      %p31 = scmp.ne.s32.totalorder %s26, %s28
      %p32 = scmp.eq.s32.totalorder %s18, 0
      %p33 = por %p31, %p32
      %p34 = scmp.ne.s32.totalorder %s26, %s28
      %p35 = scmp.eq.s32.totalorder %s23, 1
      %p36 = por %p34, %p35
      %p37 = scmp.ne.s32.totalorder %s28, %s29
      %p38 = scmp.eq.s32.totalorder %s23, 0
      %p39 = por %p37, %p38
      %p40 = scmp.ne.s32.totalorder %s28, %s29
      %p41 = scmp.eq.s32.totalorder %s24, 1
      %p42 = por %p40, %p41
      %p44 = scmp.ne.s32.totalorder %s29, %s43
      %p45 = scmp.eq.s32.totalorder %s24, 0
      %p46 = por %p44, %p45
      %s48 = sadd.s32 %s47, 1
      %p51 = scmp.eq.s32.totalorder %s18, 1
      %p52 = scmp.ne.s32.totalorder %s47, %s49
      %p53 = scmp.eq.s32.totalorder %s18, 0
      %p54 = por %p52, %p53
      %p55 = scmp.ne.s32.totalorder %s47, %s49
      %p56 = scmp.eq.s32.totalorder %s23, 1
      %p57 = por %p55, %p56
      %p58 = scmp.ne.s32.totalorder %s49, %s50
      %p59 = scmp.eq.s32.totalorder %s23, 0
      %p60 = por %p58, %p59
      %p61 = scmp.ne.s32.totalorder %s49, %s50
      %p62 = scmp.eq.s32.totalorder %s24, 1
      %p63 = por %p61, %p62
      %p65 = scmp.ne.s32.totalorder %s50, %s64
      %p66 = scmp.eq.s32.totalorder %s24, 0
      %p67 = por %p65, %p66
      %s68 = ssub.s32 %s18, %s25
      %p69 = scmp.eq.s32.totalorder %s68, 0
      %s71 = sadd.s32 %s70, 1
      %s72 = scalar_select %p69, %s70, %s71
      %p75 = pneg %p69
      %p76 = scmp.eq.s32.totalorder %s18, 1
      %p77 = por %p75, %p76
      %p78 = scmp.ne.s32.totalorder %s70, %s73
      %p79 = scmp.eq.s32.totalorder %s18, 0
      %p80 = por %p78, %p79
      %p81 = scmp.ne.s32.totalorder %s70, %s73
      %p82 = scmp.eq.s32.totalorder %s23, 1
      %p83 = por %p81, %p82
      %p84 = scmp.ne.s32.totalorder %s73, %s74
      %p85 = scmp.eq.s32.totalorder %s23, 0
      %p86 = por %p84, %p85
      %p87 = scmp.ne.s32.totalorder %s73, %s74
      %p88 = scmp.eq.s32.totalorder %s24, 1
      %p89 = por %p87, %p88
      %p91 = scmp.ne.s32.totalorder %s74, %s90
      %p92 = scmp.eq.s32.totalorder %s24, 0
      %p93 = por %p91, %p92
      %s94 = ssub.s32 %s18, %s25
      %p95 = scmp.eq.s32.totalorder %s94, 0
      %s97 = sadd.s32 %s96, 1
      %s98 = scalar_select %p95, %s96, %s97
      %p101 = pneg %p95
      %p102 = scmp.eq.s32.totalorder %s18, 1
      %p103 = por %p101, %p102
      %p104 = scmp.ne.s32.totalorder %s96, %s99
      %p105 = scmp.eq.s32.totalorder %s18, 0
      %p106 = por %p104, %p105
      %p107 = scmp.ne.s32.totalorder %s96, %s99
      %p108 = scmp.eq.s32.totalorder %s23, 1
      %p109 = por %p107, %p108
      %p110 = scmp.ne.s32.totalorder %s99, %s100
      %p111 = scmp.eq.s32.totalorder %s23, 0
      %p112 = por %p110, %p111
      %p113 = scmp.ne.s32.totalorder %s99, %s100
      %p114 = scmp.eq.s32.totalorder %s24, 1
      %p115 = por %p113, %p114
      %p117 = scmp.ne.s32.totalorder %s100, %s116
      %p118 = scmp.eq.s32.totalorder %s24, 0
      %p119 = por %p117, %p118
      %s120 = ssub.s32 %s18, %s25
      %p121 = scmp.eq.s32.totalorder %s120, 0
      %s123 = sadd.s32 %s122, 1
      %s124 = scalar_select %p121, %s122, %s123
      %p127 = pneg %p121
      %p128 = scmp.eq.s32.totalorder %s18, 1
      %p129 = por %p127, %p128
      %p130 = scmp.ne.s32.totalorder %s122, %s125
      %p131 = scmp.eq.s32.totalorder %s18, 0
      %p132 = por %p130, %p131
      %p133 = scmp.ne.s32.totalorder %s122, %s125
      %p134 = scmp.eq.s32.totalorder %s23, 1
      %p135 = por %p133, %p134
      %p136 = scmp.ne.s32.totalorder %s125, %s126
      %p137 = scmp.eq.s32.totalorder %s23, 0
      %p138 = por %p136, %p137
      %p139 = scmp.ne.s32.totalorder %s125, %s126
      %p140 = scmp.eq.s32.totalorder %s24, 1
      %p141 = por %p139, %p140
      %p143 = scmp.ne.s32.totalorder %s126, %s142
      %p144 = scmp.eq.s32.totalorder %s24, 0
      %p145 = por %p143, %p144
      %p146 = scmp.le.s32.totalorder 1, %s18
      %p147 = scmp.lt.s32.totalorder %s18, 3
      %p148 = pnand %p146, %p147
      %p149 = pneg %p148
      // Predicated region
      $region9: #{tpu_custom_call.1} parent=5 // pred_check
        _
      $region10: #{tpu_custom_call.1} parent=5 // pred_check_branch
        %151 = sbr.rel (%p148) target = $region12
      $region11: #{tpu_custom_call.1} parent=5 // pred_region
        %s152 = ssub.s32 %s18, 1
        // Predicated region
        $region13: #{tpu_custom_call.1} parent=11 // pred_check
          %p153 = pneg %p39
        $region14: #{tpu_custom_call.1} parent=11 // pred_check_branch
          %155 = sbr.rel (%p153) target = $region16
        $region15: #{tpu_custom_call.1} parent=11 // pred_region
          _
        $region16: #{tpu_custom_call.1} parent=11 // pred_fallthru
          _
        // Predicated region
        $region17: #{tpu_custom_call.1} parent=11 // pred_check
          %p156 = pneg %p60
        $region18: #{tpu_custom_call.1} parent=11 // pred_check_branch
          %158 = sbr.rel (%p156) target = $region20
        $region19: #{tpu_custom_call.1} parent=11 // pred_region
          %s160 = ssub.s32 256, 256
          %161 = vsyncadd [#allocation4], %s160
          %s162 = sshll.u32 [#allocation3], 4
          %s163 = int_to_ptr.vmem [resolvable:$true] %s162
          %168 = dma.hbm_to_vmem [thread:$0]  %s1, 256, %s163, [#allocation4], 128, 128, 8
        $region20: #{tpu_custom_call.1} parent=11 // pred_fallthru
          _
      $region12: #{tpu_custom_call.1} parent=5 // pred_fallthru
        _
      %p169 = scmp.lt.s32.totalorder %s18, 2
      // Predicated region
      $region21: #{tpu_custom_call.1} parent=5 // pred_check
        %p170 = pneg %p169
      $region22: #{tpu_custom_call.1} parent=5 // pred_check_branch
        %172 = sbr.rel (%p170) target = $region24
      $region23: #{tpu_custom_call.1} parent=5 // pred_region
        // Predicated region
        $region25: #{tpu_custom_call.1} parent=23 // pred_check
          %p173 = pneg %p80
        $region26: #{tpu_custom_call.1} parent=23 // pred_check_branch
          %175 = sbr.rel (%p173) target = $region28
        $region27: #{tpu_custom_call.1} parent=23 // pred_region
          %s176 = sand.u32 %s18, 1
          %s177 = scalar_lea.sflag [#allocation7], %s176
          %s178 = sand.u32 %s70, 1
          %s179 = smul.addr %s178, 16
          %s180 = scalar_lea.vmem [#allocation6], %s179
          %s182 = ssub.s32 256, 256
          %183 = vsyncadd %s177, %s182
          %s184 = smul.addr %s18, 2
          %s185 = smul.addr %s184, 128
          %s186 = scalar_lea.hbm %s2, %s185
          %s187 = sshll.u32 %s180, 4
          %s188 = int_to_ptr.vmem [resolvable:$true] %s187
          %193 = dma.hbm_to_vmem [thread:$0]  %s186, 256, %s188, %s177, 128, 128, 8
        $region28: #{tpu_custom_call.1} parent=23 // pred_fallthru
          _
        // Predicated region
        $region29: #{tpu_custom_call.1} parent=23 // pred_check
          %p194 = pneg %p106
        $region30: #{tpu_custom_call.1} parent=23 // pred_check_branch
          %196 = sbr.rel (%p194) target = $region32
        $region31: #{tpu_custom_call.1} parent=23 // pred_region
          %s197 = sand.u32 %s18, 1
          %s198 = scalar_lea.sflag [#allocation7], %s197
          %s199 = sand.u32 %s96, 1
          %s200 = smul.addr %s199, 16
          %s201 = scalar_lea.vmem [#allocation8], %s200
          %s203 = ssub.s32 256, 256
          %204 = vsyncadd %s198, %s203
          %s205 = smul.addr %s18, 2
          %s206 = smul.addr %s205, 128
          %s207 = scalar_lea.hbm %s3, %s206
          %s208 = sshll.u32 %s201, 4
          %s209 = int_to_ptr.vmem [resolvable:$true] %s208
          %214 = dma.hbm_to_vmem [thread:$0]  %s207, 256, %s209, %s198, 128, 128, 8
        $region32: #{tpu_custom_call.1} parent=23 // pred_fallthru
          _
      $region24: #{tpu_custom_call.1} parent=5 // pred_fallthru
        _
      %p215 = scmp.le.s32.totalorder 1, %s18
      %p216 = scmp.lt.s32.totalorder %s18, 3
      %p217 = pnand %p215, %p216
      %p218 = pneg %p217
      // Predicated region
      $region33: #{tpu_custom_call.1} parent=5 // pred_check
        _
      $region34: #{tpu_custom_call.1} parent=5 // pred_check_branch
        %220 = sbr.rel (%p217) target = $region36
      $region35: #{tpu_custom_call.1} parent=5 // pred_region
        %s221 = ssub.s32 %s18, 1
        // Predicated region
        $region37: #{tpu_custom_call.1} parent=35 // pred_check
          %p222 = pneg %p60
        $region38: #{tpu_custom_call.1} parent=35 // pred_check_branch
          %224 = sbr.rel (%p222) target = $region40
        $region39: #{tpu_custom_call.1} parent=35 // pred_region
          %225 = dma.done [#allocation4], 256
        $region40: #{tpu_custom_call.1} parent=35 // pred_fallthru
          _
        %s226 = sand.u32 %s23, 1
        %s227 = scalar_lea.sflag [#allocation7], %s226
        %s228 = sand.u32 %s73, 1
        %s229 = smul.addr %s228, 16
        %s230 = scalar_lea.vmem [#allocation6], %s229
        // Predicated region
        $region41: #{tpu_custom_call.1} parent=35 // pred_check
          %p231 = pneg %p86
        $region42: #{tpu_custom_call.1} parent=35 // pred_check_branch
          %233 = sbr.rel (%p231) target = $region44
        $region43: #{tpu_custom_call.1} parent=35 // pred_region
          %234 = dma.done %s227, 256
        $region44: #{tpu_custom_call.1} parent=35 // pred_fallthru
          _
        %s235 = sand.u32 %s23, 1
        %s236 = scalar_lea.sflag [#allocation7], %s235
        %s237 = sand.u32 %s99, 1
        %s238 = smul.addr %s237, 16
        %s239 = scalar_lea.vmem [#allocation8], %s238
        // Predicated region
        $region45: #{tpu_custom_call.1} parent=35 // pred_check
          %p240 = pneg %p112
        $region46: #{tpu_custom_call.1} parent=35 // pred_check_branch
          %242 = sbr.rel (%p240) target = $region48
        $region47: #{tpu_custom_call.1} parent=35 // pred_region
          %243 = dma.done %s236, 256
        $region48: #{tpu_custom_call.1} parent=35 // pred_fallthru
          _
        %p244 = pneg %p39
        %p245 = pneg %p36
        %p246 = pneg %p60
        %p247 = pneg %p57
        %s248 = sand.u32 %s23, 1
        %s249 = scalar_lea.sflag [#allocation7], %s248
        %s250 = sand.u32 %s73, 1
        %s251 = smul.addr %s250, 16
        %s252 = scalar_lea.vmem [#allocation6], %s251
        %p253 = pneg %p86
        %p254 = pneg %p83
        %s255 = sand.u32 %s23, 1
        %s256 = scalar_lea.sflag [#allocation7], %s255
        %s257 = sand.u32 %s99, 1
        %s258 = smul.addr %s257, 16
        %s259 = scalar_lea.vmem [#allocation8], %s258
        %p260 = pneg %p112
        %p261 = pneg %p109
        %p262 = pneg %p138
        %p263 = pneg %p135
        %s264 = sand.u32 %s125, 1
        %s265 = scalar_lea.sflag [#allocation5], %s264
        %s266 = sand.u32 %s125, 1
        %s267 = smul.addr %s266, 16
        %s268 = scalar_lea.vmem [#allocation9], %s267
        %s269 = sld [smem:[#allocation2]]
        %v270 = vld [vmem:[#allocation3] sm:$0xff]
        %v271 = vld [vmem:[#allocation3 + $0x8] sm:$0xff]
        %v272 = vld [vmem:[%s230] sm:$0xff]
        %v273 = vld [vmem:[%s230 + $0x8] sm:$0xff]
        %v274 = vld [vmem:[%s239] sm:$0xff]
        %v275 = vld [vmem:[%s239 + $0x8] sm:$0xff]
        %v276 = vstv %s269
        %v277 = vmul.f32 %v276, %v274
        %v278 = vmul.f32 %v276, %v275
        %vm279 = vcmask 130048
        %v281 = vsel %vm279, %v270, 0
        %v284 = vsel %vm279, %v271, 0
        %286 = vmatprep.subr.mxu0 0.0
        %287 = vmatpush1.msra.mxu0 0.0
        %288 = vmatprep.subr.mxu0 0.0
        %289 = vmatpush1.msra.mxu0 0.0
        %290 = vmatprep.subr.mxu0 0.0
        %291 = vmatpush1.msra.mxu0 0.0
        %292 = vmatprep.subr.mxu0 0.0
        %293 = vmatpush1.msra.mxu0 0.0
        %294 = vmatprep.subr.mxu0 0.0
        %295 = vmatpush1.msra.mxu0 0.0
        %296 = vmatprep.subr.mxu0 0.0
        %297 = vmatpush1.msra.mxu0 0.0
        %298 = vmatprep.subr.mxu0 0.0
        %299 = vmatpush1.msra.mxu0 0.0
        %300 = vmatprep.subr.mxu0 0.0
        %301 = vmatpush1.msra.mxu0 0.0
        %302 = vmatprep.subr.mxu0 0.0
        %303 = vmatpush1.msra.mxu0 0.0
        %304 = vmatprep.subr.mxu0 0.0
        %305 = vmatpush1.msra.mxu0 0.0
        %306 = vmatprep.subr.mxu0 0.0
        %307 = vmatpush1.msra.mxu0 0.0
        %308 = vmatprep.subr.mxu0 0.0
        %309 = vmatpush1.msra.mxu0 0.0
        %310 = vmatprep.subr.mxu0 0.0
        %311 = vmatpush1.msra.mxu0 0.0
        %312 = vmatprep.subr.mxu0 0.0
        %313 = vmatpush1.msra.mxu0 0.0
        %314 = vmatprep.subr.mxu0 0.0
        %v315 = vand.u32 %v273, 4294901760
        %316 = vmatpush1.msra.mxu0 %v315
        %317 = vmatprep.subr.mxu0 0.0
        %v318 = vand.u32 %v272, 4294901760
        %319 = vmatpush1.msra.mxu0 %v318
        %320 = vmatprep.subr.mxu0 0.0
        %321 = vmatpush2.msra.mxu0 0.0
        %322 = vmatprep.subr.mxu0 0.0
        %323 = vmatpush2.msra.mxu0 0.0
        %324 = vmatprep.subr.mxu0 0.0
        %325 = vmatpush2.msra.mxu0 0.0
        %326 = vmatprep.subr.mxu0 0.0
        %327 = vmatpush2.msra.mxu0 0.0
        %328 = vmatprep.subr.mxu0 0.0
        %329 = vmatpush2.msra.mxu0 0.0
        %330 = vmatprep.subr.mxu0 0.0
        %331 = vmatpush2.msra.mxu0 0.0
        %332 = vmatprep.subr.mxu0 0.0
        %333 = vmatpush2.msra.mxu0 0.0
        %334 = vmatprep.subr.mxu0 0.0
        %335 = vmatpush2.msra.mxu0 0.0
        %336 = vmatprep.subr.mxu0 0.0
        %337 = vmatpush2.msra.mxu0 0.0
        %338 = vmatprep.subr.mxu0 0.0
        %339 = vmatpush2.msra.mxu0 0.0
        %340 = vmatprep.subr.mxu0 0.0
        %341 = vmatpush2.msra.mxu0 0.0
        %342 = vmatprep.subr.mxu0 0.0
        %343 = vmatpush2.msra.mxu0 0.0
        %344 = vmatprep.subr.mxu0 0.0
        %345 = vmatpush2.msra.mxu0 0.0
        %346 = vmatprep.subr.mxu0 0.0
        %347 = vmatpush2.msra.mxu0 0.0
        %348 = vmatprep.subr.mxu0 0.0
        %349 = vmatpush2.msra.mxu0 0.0
        %350 = vmatprep.subr.mxu0 0.0
        %351 = vmatpush2.msra.mxu0 0.0
        %352 = vmatprep.mubr.f32.mxu0 0.0
        %v353 = vand.u32 %v281, 4294901760
        %v354 = vsub.f32 %v281, %v353
        %v355 = vand.u32 %v354, 4294901760
        %v356 = vsub.f32 %v354, %v355
        %v357 = vand.u32 %v356, 4294901760
        %358 = vmatmul.mubr.f32.gmra.mxu0 %v357
        %v359 = vpop.f32.mrf.mxu0
        %v360 = vadd.f32 %v277, %v359
        %v361 = vpop.f32.mrf.mxu0
        %362 = vmatprep.mubr.f32.mxu0 0.0
        %v363 = vand.u32 %v284, 4294901760
        %v364 = vsub.f32 %v284, %v363
        %v365 = vand.u32 %v364, 4294901760
        %v366 = vsub.f32 %v364, %v365
        %v367 = vand.u32 %v366, 4294901760
        %368 = vmatmul.mubr.f32.gmra.mxu0 %v367
        %v369 = vpop.f32.mrf.mxu0
        %v370 = vadd.f32 %v278, %v369
        %v371 = vpop.f32.mrf.mxu0
        %372 = vdwg.mxu0
        %373 = vmatprep.subr.mxu0 0.0
        %374 = vmatpush1.msra.mxu0 0.0
        %375 = vmatprep.subr.mxu0 0.0
        %376 = vmatpush1.msra.mxu0 0.0
        %377 = vmatprep.subr.mxu0 0.0
        %378 = vmatpush1.msra.mxu0 0.0
        %379 = vmatprep.subr.mxu0 0.0
        %380 = vmatpush1.msra.mxu0 0.0
        %381 = vmatprep.subr.mxu0 0.0
        %382 = vmatpush1.msra.mxu0 0.0
        %383 = vmatprep.subr.mxu0 0.0
        %384 = vmatpush1.msra.mxu0 0.0
        %385 = vmatprep.subr.mxu0 0.0
        %386 = vmatpush1.msra.mxu0 0.0
        %387 = vmatprep.subr.mxu0 0.0
        %388 = vmatpush1.msra.mxu0 0.0
        %389 = vmatprep.subr.mxu0 0.0
        %390 = vmatpush1.msra.mxu0 0.0
        %391 = vmatprep.subr.mxu0 0.0
        %392 = vmatpush1.msra.mxu0 0.0
        %393 = vmatprep.subr.mxu0 0.0
        %394 = vmatpush1.msra.mxu0 0.0
        %395 = vmatprep.subr.mxu0 0.0
        %396 = vmatpush1.msra.mxu0 0.0
        %397 = vmatprep.subr.mxu0 0.0
        %398 = vmatpush1.msra.mxu0 0.0
        %399 = vmatprep.subr.mxu0 0.0
        %400 = vmatpush1.msra.mxu0 0.0
        %401 = vmatprep.subr.mxu0 0.0
        %v402 = vand.u32 %v273, 4294901760
        %v403 = vsub.f32 %v273, %v402
        %v404 = vand.u32 %v403, 4294901760
        %v405 = vsub.f32 %v403, %v404
        %v406 = vand.u32 %v405, 4294901760
        %407 = vmatpush1.msra.mxu0 %v406
        %408 = vmatprep.subr.mxu0 0.0
        %v409 = vand.u32 %v272, 4294901760
        %v410 = vsub.f32 %v272, %v409
        %v411 = vand.u32 %v410, 4294901760
        %v412 = vsub.f32 %v410, %v411
        %v413 = vand.u32 %v412, 4294901760
        %414 = vmatpush1.msra.mxu0 %v413
        %415 = vmatprep.subr.mxu0 0.0
        %416 = vmatpush2.msra.mxu0 0.0
        %417 = vmatprep.subr.mxu0 0.0
        %418 = vmatpush2.msra.mxu0 0.0
        %419 = vmatprep.subr.mxu0 0.0
        %420 = vmatpush2.msra.mxu0 0.0
        %421 = vmatprep.subr.mxu0 0.0
        %422 = vmatpush2.msra.mxu0 0.0
        %423 = vmatprep.subr.mxu0 0.0
        %424 = vmatpush2.msra.mxu0 0.0
        %425 = vmatprep.subr.mxu0 0.0
        %426 = vmatpush2.msra.mxu0 0.0
        %427 = vmatprep.subr.mxu0 0.0
        %428 = vmatpush2.msra.mxu0 0.0
        %429 = vmatprep.subr.mxu0 0.0
        %430 = vmatpush2.msra.mxu0 0.0
        %431 = vmatprep.subr.mxu0 0.0
        %432 = vmatpush2.msra.mxu0 0.0
        %433 = vmatprep.subr.mxu0 0.0
        %434 = vmatpush2.msra.mxu0 0.0
        %435 = vmatprep.subr.mxu0 0.0
        %436 = vmatpush2.msra.mxu0 0.0
        %437 = vmatprep.subr.mxu0 0.0
        %438 = vmatpush2.msra.mxu0 0.0
        %439 = vmatprep.subr.mxu0 0.0
        %440 = vmatpush2.msra.mxu0 0.0
        %441 = vmatprep.subr.mxu0 0.0
        %442 = vmatpush2.msra.mxu0 0.0
        %443 = vmatprep.subr.mxu0 0.0
        %444 = vmatpush2.msra.mxu0 0.0
        %445 = vmatprep.subr.mxu0 0.0
        %446 = vmatpush2.msra.mxu0 0.0
        %447 = vmatprep.mubr.f32.mxu0 0.0
        %v448 = vand.u32 %v281, 4294901760
        %449 = vmatmul.mubr.f32.gmra.mxu0 %v448
        %v450 = vpop.f32.mrf.mxu0
        %v451 = vadd.f32 %v360, %v450
        %v452 = vpop.f32.mrf.mxu0
        %453 = vmatprep.mubr.f32.mxu0 0.0
        %v454 = vand.u32 %v284, 4294901760
        %455 = vmatmul.mubr.f32.gmra.mxu0 %v454
        %v456 = vpop.f32.mrf.mxu0
        %v457 = vadd.f32 %v370, %v456
        %v458 = vpop.f32.mrf.mxu0
        %459 = vdwg.mxu0
        %460 = vmatprep.subr.mxu0 0.0
        %461 = vmatpush1.msra.mxu0 0.0
        %462 = vmatprep.subr.mxu0 0.0
        %463 = vmatpush1.msra.mxu0 0.0
        %464 = vmatprep.subr.mxu0 0.0
        %465 = vmatpush1.msra.mxu0 0.0
        %466 = vmatprep.subr.mxu0 0.0
        %467 = vmatpush1.msra.mxu0 0.0
        %468 = vmatprep.subr.mxu0 0.0
        %469 = vmatpush1.msra.mxu0 0.0
        %470 = vmatprep.subr.mxu0 0.0
        %471 = vmatpush1.msra.mxu0 0.0
        %472 = vmatprep.subr.mxu0 0.0
        %473 = vmatpush1.msra.mxu0 0.0
        %474 = vmatprep.subr.mxu0 0.0
        %475 = vmatpush1.msra.mxu0 0.0
        %476 = vmatprep.subr.mxu0 0.0
        %477 = vmatpush1.msra.mxu0 0.0
        %478 = vmatprep.subr.mxu0 0.0
        %479 = vmatpush1.msra.mxu0 0.0
        %480 = vmatprep.subr.mxu0 0.0
        %481 = vmatpush1.msra.mxu0 0.0
        %482 = vmatprep.subr.mxu0 0.0
        %483 = vmatpush1.msra.mxu0 0.0
        %484 = vmatprep.subr.mxu0 0.0
        %485 = vmatpush1.msra.mxu0 0.0
        %486 = vmatprep.subr.mxu0 0.0
        %487 = vmatpush1.msra.mxu0 0.0
        %488 = vmatprep.subr.mxu0 0.0
        %v489 = vand.u32 %v273, 4294901760
        %v490 = vsub.f32 %v273, %v489
        %491 = vmatpush1.msra.mxu0 %v490
        %492 = vmatprep.subr.mxu0 0.0
        %v493 = vand.u32 %v272, 4294901760
        %v494 = vsub.f32 %v272, %v493
        %495 = vmatpush1.msra.mxu0 %v494
        %496 = vmatprep.subr.mxu0 0.0
        %497 = vmatpush2.msra.mxu0 0.0
        %498 = vmatprep.subr.mxu0 0.0
        %499 = vmatpush2.msra.mxu0 0.0
        %500 = vmatprep.subr.mxu0 0.0
        %501 = vmatpush2.msra.mxu0 0.0
        %502 = vmatprep.subr.mxu0 0.0
        %503 = vmatpush2.msra.mxu0 0.0
        %504 = vmatprep.subr.mxu0 0.0
        %505 = vmatpush2.msra.mxu0 0.0
        %506 = vmatprep.subr.mxu0 0.0
        %507 = vmatpush2.msra.mxu0 0.0
        %508 = vmatprep.subr.mxu0 0.0
        %509 = vmatpush2.msra.mxu0 0.0
        %510 = vmatprep.subr.mxu0 0.0
        %511 = vmatpush2.msra.mxu0 0.0
        %512 = vmatprep.subr.mxu0 0.0
        %513 = vmatpush2.msra.mxu0 0.0
        %514 = vmatprep.subr.mxu0 0.0
        %515 = vmatpush2.msra.mxu0 0.0
        %516 = vmatprep.subr.mxu0 0.0
        %517 = vmatpush2.msra.mxu0 0.0
        %518 = vmatprep.subr.mxu0 0.0
        %519 = vmatpush2.msra.mxu0 0.0
        %520 = vmatprep.subr.mxu0 0.0
        %521 = vmatpush2.msra.mxu0 0.0
        %522 = vmatprep.subr.mxu0 0.0
        %523 = vmatpush2.msra.mxu0 0.0
        %524 = vmatprep.subr.mxu0 0.0
        %525 = vmatpush2.msra.mxu0 0.0
        %526 = vmatprep.subr.mxu0 0.0
        %527 = vmatpush2.msra.mxu0 0.0
        %528 = vmatprep.mubr.f32.mxu0 0.0
        %v529 = vand.u32 %v281, 4294901760
        %v530 = vsub.f32 %v281, %v529
        %531 = vmatmul.mubr.f32.gmra.mxu0 %v530
        %v532 = vpop.f32.mrf.mxu0
        %v533 = vadd.f32 %v451, %v532
        %v534 = vpop.f32.mrf.mxu0
        %535 = vmatprep.mubr.f32.mxu0 0.0
        %v536 = vand.u32 %v284, 4294901760
        %v537 = vsub.f32 %v284, %v536
        %538 = vmatmul.mubr.f32.gmra.mxu0 %v537
        %v539 = vpop.f32.mrf.mxu0
        %v540 = vadd.f32 %v457, %v539
        %v541 = vpop.f32.mrf.mxu0
        %542 = vdwg.mxu0
        %543 = vmatprep.subr.mxu0 0.0
        %544 = vmatpush1.msra.mxu0 0.0
        %545 = vmatprep.subr.mxu0 0.0
        %546 = vmatpush1.msra.mxu0 0.0
        %547 = vmatprep.subr.mxu0 0.0
        %548 = vmatpush1.msra.mxu0 0.0
        %549 = vmatprep.subr.mxu0 0.0
        %550 = vmatpush1.msra.mxu0 0.0
        %551 = vmatprep.subr.mxu0 0.0
        %552 = vmatpush1.msra.mxu0 0.0
        %553 = vmatprep.subr.mxu0 0.0
        %554 = vmatpush1.msra.mxu0 0.0
        %555 = vmatprep.subr.mxu0 0.0
        %556 = vmatpush1.msra.mxu0 0.0
        %557 = vmatprep.subr.mxu0 0.0
        %558 = vmatpush1.msra.mxu0 0.0
        %559 = vmatprep.subr.mxu0 0.0
        %560 = vmatpush1.msra.mxu0 0.0
        %561 = vmatprep.subr.mxu0 0.0
        %562 = vmatpush1.msra.mxu0 0.0
        %563 = vmatprep.subr.mxu0 0.0
        %564 = vmatpush1.msra.mxu0 0.0
        %565 = vmatprep.subr.mxu0 0.0
        %566 = vmatpush1.msra.mxu0 0.0
        %567 = vmatprep.subr.mxu0 0.0
        %568 = vmatpush1.msra.mxu0 0.0
        %569 = vmatprep.subr.mxu0 0.0
        %570 = vmatpush1.msra.mxu0 0.0
        %571 = vmatprep.subr.mxu0 0.0
        %v572 = vand.u32 %v273, 4294901760
        %573 = vmatpush1.msra.mxu0 %v572
        %574 = vmatprep.subr.mxu0 0.0
        %v575 = vand.u32 %v272, 4294901760
        %576 = vmatpush1.msra.mxu0 %v575
        %577 = vmatprep.subr.mxu0 0.0
        %578 = vmatpush2.msra.mxu0 0.0
        %579 = vmatprep.subr.mxu0 0.0
        %580 = vmatpush2.msra.mxu0 0.0
        %581 = vmatprep.subr.mxu0 0.0
        %582 = vmatpush2.msra.mxu0 0.0
        %583 = vmatprep.subr.mxu0 0.0
        %584 = vmatpush2.msra.mxu0 0.0
        %585 = vmatprep.subr.mxu0 0.0
        %586 = vmatpush2.msra.mxu0 0.0
        %587 = vmatprep.subr.mxu0 0.0
        %588 = vmatpush2.msra.mxu0 0.0
        %589 = vmatprep.subr.mxu0 0.0
        %590 = vmatpush2.msra.mxu0 0.0
        %591 = vmatprep.subr.mxu0 0.0
        %592 = vmatpush2.msra.mxu0 0.0
        %593 = vmatprep.subr.mxu0 0.0
        %594 = vmatpush2.msra.mxu0 0.0
        %595 = vmatprep.subr.mxu0 0.0
        %596 = vmatpush2.msra.mxu0 0.0
        %597 = vmatprep.subr.mxu0 0.0
        %598 = vmatpush2.msra.mxu0 0.0
        %599 = vmatprep.subr.mxu0 0.0
        %600 = vmatpush2.msra.mxu0 0.0
        %601 = vmatprep.subr.mxu0 0.0
        %602 = vmatpush2.msra.mxu0 0.0
        %603 = vmatprep.subr.mxu0 0.0
        %604 = vmatpush2.msra.mxu0 0.0
        %605 = vmatprep.subr.mxu0 0.0
        %606 = vmatpush2.msra.mxu0 0.0
        %607 = vmatprep.subr.mxu0 0.0
        %608 = vmatpush2.msra.mxu0 0.0
        %609 = vmatprep.mubr.f32.mxu0 0.0
        %v610 = vand.u32 %v281, 4294901760
        %v611 = vsub.f32 %v281, %v610
        %v612 = vand.u32 %v611, 4294901760
        %613 = vmatmul.mubr.f32.gmra.mxu0 %v612
        %v614 = vpop.f32.mrf.mxu0
        %v615 = vadd.f32 %v533, %v614
        %v616 = vpop.f32.mrf.mxu0
        %617 = vmatprep.mubr.f32.mxu0 0.0
        %v618 = vand.u32 %v284, 4294901760
        %v619 = vsub.f32 %v284, %v618
        %v620 = vand.u32 %v619, 4294901760
        %621 = vmatmul.mubr.f32.gmra.mxu0 %v620
        %v622 = vpop.f32.mrf.mxu0
        %v623 = vadd.f32 %v540, %v622
        %v624 = vpop.f32.mrf.mxu0
        %625 = vdwg.mxu0
        %626 = vmatprep.subr.mxu0 0.0
        %627 = vmatpush1.msra.mxu0 0.0
        %628 = vmatprep.subr.mxu0 0.0
        %629 = vmatpush1.msra.mxu0 0.0
        %630 = vmatprep.subr.mxu0 0.0
        %631 = vmatpush1.msra.mxu0 0.0
        %632 = vmatprep.subr.mxu0 0.0
        %633 = vmatpush1.msra.mxu0 0.0
        %634 = vmatprep.subr.mxu0 0.0
        %635 = vmatpush1.msra.mxu0 0.0
        %636 = vmatprep.subr.mxu0 0.0
        %637 = vmatpush1.msra.mxu0 0.0
        %638 = vmatprep.subr.mxu0 0.0
        %639 = vmatpush1.msra.mxu0 0.0
        %640 = vmatprep.subr.mxu0 0.0
        %641 = vmatpush1.msra.mxu0 0.0
        %642 = vmatprep.subr.mxu0 0.0
        %643 = vmatpush1.msra.mxu0 0.0
        %644 = vmatprep.subr.mxu0 0.0
        %645 = vmatpush1.msra.mxu0 0.0
        %646 = vmatprep.subr.mxu0 0.0
        %647 = vmatpush1.msra.mxu0 0.0
        %648 = vmatprep.subr.mxu0 0.0
        %649 = vmatpush1.msra.mxu0 0.0
        %650 = vmatprep.subr.mxu0 0.0
        %651 = vmatpush1.msra.mxu0 0.0
        %652 = vmatprep.subr.mxu0 0.0
        %653 = vmatpush1.msra.mxu0 0.0
        %654 = vmatprep.subr.mxu0 0.0
        %v655 = vand.u32 %v273, 4294901760
        %v656 = vsub.f32 %v273, %v655
        %v657 = vand.u32 %v656, 4294901760
        %658 = vmatpush1.msra.mxu0 %v657
        %659 = vmatprep.subr.mxu0 0.0
        %v660 = vand.u32 %v272, 4294901760
        %v661 = vsub.f32 %v272, %v660
        %v662 = vand.u32 %v661, 4294901760
        %663 = vmatpush1.msra.mxu0 %v662
        %664 = vmatprep.subr.mxu0 0.0
        %665 = vmatpush2.msra.mxu0 0.0
        %666 = vmatprep.subr.mxu0 0.0
        %667 = vmatpush2.msra.mxu0 0.0
        %668 = vmatprep.subr.mxu0 0.0
        %669 = vmatpush2.msra.mxu0 0.0
        %670 = vmatprep.subr.mxu0 0.0
        %671 = vmatpush2.msra.mxu0 0.0
        %672 = vmatprep.subr.mxu0 0.0
        %673 = vmatpush2.msra.mxu0 0.0
        %674 = vmatprep.subr.mxu0 0.0
        %675 = vmatpush2.msra.mxu0 0.0
        %676 = vmatprep.subr.mxu0 0.0
        %677 = vmatpush2.msra.mxu0 0.0
        %678 = vmatprep.subr.mxu0 0.0
        %679 = vmatpush2.msra.mxu0 0.0
        %680 = vmatprep.subr.mxu0 0.0
        %681 = vmatpush2.msra.mxu0 0.0
        %682 = vmatprep.subr.mxu0 0.0
        %683 = vmatpush2.msra.mxu0 0.0
        %684 = vmatprep.subr.mxu0 0.0
        %685 = vmatpush2.msra.mxu0 0.0
        %686 = vmatprep.subr.mxu0 0.0
        %687 = vmatpush2.msra.mxu0 0.0
        %688 = vmatprep.subr.mxu0 0.0
        %689 = vmatpush2.msra.mxu0 0.0
        %690 = vmatprep.subr.mxu0 0.0
        %691 = vmatpush2.msra.mxu0 0.0
        %692 = vmatprep.subr.mxu0 0.0
        %693 = vmatpush2.msra.mxu0 0.0
        %694 = vmatprep.subr.mxu0 0.0
        %695 = vmatpush2.msra.mxu0 0.0
        %696 = vmatprep.mubr.f32.mxu0 0.0
        %v697 = vand.u32 %v281, 4294901760
        %698 = vmatmul.mubr.f32.gmra.mxu0 %v697
        %v699 = vpop.f32.mrf.mxu0
        %v700 = vadd.f32 %v615, %v699
        %v701 = vpop.f32.mrf.mxu0
        %702 = vmatprep.mubr.f32.mxu0 0.0
        %v703 = vand.u32 %v284, 4294901760
        %704 = vmatmul.mubr.f32.gmra.mxu0 %v703
        %v705 = vpop.f32.mrf.mxu0
        %v706 = vadd.f32 %v623, %v705
        %v707 = vpop.f32.mrf.mxu0
        %708 = vdwg.mxu0
        %709 = vmatprep.subr.mxu0 0.0
        %710 = vmatpush1.msra.mxu0 0.0
        %711 = vmatprep.subr.mxu0 0.0
        %712 = vmatpush1.msra.mxu0 0.0
        %713 = vmatprep.subr.mxu0 0.0
        %714 = vmatpush1.msra.mxu0 0.0
        %715 = vmatprep.subr.mxu0 0.0
        %716 = vmatpush1.msra.mxu0 0.0
        %717 = vmatprep.subr.mxu0 0.0
        %718 = vmatpush1.msra.mxu0 0.0
        %719 = vmatprep.subr.mxu0 0.0
        %720 = vmatpush1.msra.mxu0 0.0
        %721 = vmatprep.subr.mxu0 0.0
        %722 = vmatpush1.msra.mxu0 0.0
        %723 = vmatprep.subr.mxu0 0.0
        %724 = vmatpush1.msra.mxu0 0.0
        %725 = vmatprep.subr.mxu0 0.0
        %726 = vmatpush1.msra.mxu0 0.0
        %727 = vmatprep.subr.mxu0 0.0
        %728 = vmatpush1.msra.mxu0 0.0
        %729 = vmatprep.subr.mxu0 0.0
        %730 = vmatpush1.msra.mxu0 0.0
        %731 = vmatprep.subr.mxu0 0.0
        %732 = vmatpush1.msra.mxu0 0.0
        %733 = vmatprep.subr.mxu0 0.0
        %734 = vmatpush1.msra.mxu0 0.0
        %735 = vmatprep.subr.mxu0 0.0
        %736 = vmatpush1.msra.mxu0 0.0
        %737 = vmatprep.subr.mxu0 0.0
        %v738 = vand.u32 %v273, 4294901760
        %739 = vmatpush1.msra.mxu0 %v738
        %740 = vmatprep.subr.mxu0 0.0
        %v741 = vand.u32 %v272, 4294901760
        %742 = vmatpush1.msra.mxu0 %v741
        %743 = vmatprep.subr.mxu0 0.0
        %744 = vmatpush2.msra.mxu0 0.0
        %745 = vmatprep.subr.mxu0 0.0
        %746 = vmatpush2.msra.mxu0 0.0
        %747 = vmatprep.subr.mxu0 0.0
        %748 = vmatpush2.msra.mxu0 0.0
        %749 = vmatprep.subr.mxu0 0.0
        %750 = vmatpush2.msra.mxu0 0.0
        %751 = vmatprep.subr.mxu0 0.0
        %752 = vmatpush2.msra.mxu0 0.0
        %753 = vmatprep.subr.mxu0 0.0
        %754 = vmatpush2.msra.mxu0 0.0
        %755 = vmatprep.subr.mxu0 0.0
        %756 = vmatpush2.msra.mxu0 0.0
        %757 = vmatprep.subr.mxu0 0.0
        %758 = vmatpush2.msra.mxu0 0.0
        %759 = vmatprep.subr.mxu0 0.0
        %760 = vmatpush2.msra.mxu0 0.0
        %761 = vmatprep.subr.mxu0 0.0
        %762 = vmatpush2.msra.mxu0 0.0
        %763 = vmatprep.subr.mxu0 0.0
        %764 = vmatpush2.msra.mxu0 0.0
        %765 = vmatprep.subr.mxu0 0.0
        %766 = vmatpush2.msra.mxu0 0.0
        %767 = vmatprep.subr.mxu0 0.0
        %768 = vmatpush2.msra.mxu0 0.0
        %769 = vmatprep.subr.mxu0 0.0
        %770 = vmatpush2.msra.mxu0 0.0
        %771 = vmatprep.subr.mxu0 0.0
        %772 = vmatpush2.msra.mxu0 0.0
        %773 = vmatprep.subr.mxu0 0.0
        %774 = vmatpush2.msra.mxu0 0.0
        %775 = vmatprep.mubr.f32.mxu0 0.0
        %v776 = vand.u32 %v281, 4294901760
        %777 = vmatmul.mubr.f32.gmra.mxu0 %v776
        %v778 = vpop.f32.mrf.mxu0
        %v779 = vadd.f32 %v700, %v778
        %v780 = vpop.f32.mrf.mxu0
        %781 = vmatprep.mubr.f32.mxu0 0.0
        %v782 = vand.u32 %v284, 4294901760
        %783 = vmatmul.mubr.f32.gmra.mxu0 %v782
        %v784 = vpop.f32.mrf.mxu0
        %v785 = vadd.f32 %v706, %v784
        %v786 = vpop.f32.mrf.mxu0
        %787 = vdwg.mxu0
        %788 = vst [vmem:[%s268] sm:$0xff] %v779
        %789 = vst [vmem:[%s268 + $0x8] sm:$0xff] %v785
        %s790 = sand.u32 %s125, 1
        %s791 = scalar_lea.sflag [#allocation5], %s790
        %s792 = sand.u32 %s125, 1
        %s793 = smul.addr %s792, 16
        %s794 = scalar_lea.vmem [#allocation9], %s793
        // Predicated region
        $region49: #{tpu_custom_call.1} parent=35 // pred_check
          %p795 = pneg %p135
        $region50: #{tpu_custom_call.1} parent=35 // pred_check_branch
          %797 = sbr.rel (%p795) target = $region52
        $region51: #{tpu_custom_call.1} parent=35 // pred_region
          %s799 = ssub.s32 256, 256
          %800 = vsyncadd %s791, %s799
          %s801 = smul.addr %s23, 2
          %s802 = smul.addr %s801, 128
          %s803 = scalar_lea.hbm %s4, %s802
          %s804 = sshll.u32 %s794, 4
          %s805 = int_to_ptr.vmem [resolvable:$true] %s804
          %810 = dma.vmem_to_hbm [thread:$0]  %s805, 256, %s803, %s791, 128, 128, 8
        $region52: #{tpu_custom_call.1} parent=35 // pred_fallthru
          _
      $region36: #{tpu_custom_call.1} parent=5 // pred_fallthru
        _
      %p811 = scmp.le.s32.totalorder 2, %s18
      // Predicated region
      $region53: #{tpu_custom_call.1} parent=5 // pred_check
        %p812 = pneg %p811
      $region54: #{tpu_custom_call.1} parent=5 // pred_check_branch
        %814 = sbr.rel (%p812) target = $region56
      $region55: #{tpu_custom_call.1} parent=5 // pred_region
        %s815 = ssub.s32 %s18, 2
        // Predicated region
        $region57: #{tpu_custom_call.1} parent=55 // pred_check
          %p816 = pneg %p141
        $region58: #{tpu_custom_call.1} parent=55 // pred_check_branch
          %818 = sbr.rel (%p816) target = $region60
        $region59: #{tpu_custom_call.1} parent=55 // pred_region
          %s819 = sand.u32 %s126, 1
          %s820 = scalar_lea.sflag [#allocation5], %s819
          %s821 = sand.u32 %s126, 1
          %s822 = smul.addr %s821, 16
          %s823 = scalar_lea.vmem [#allocation9], %s822
          %824 = dma.done %s820, 256
        $region60: #{tpu_custom_call.1} parent=55 // pred_fallthru
          _
      $region56: #{tpu_custom_call.1} parent=5 // pred_fallthru
        _
    $region6: #{tpu_custom_call.1} parent=1 // loop_footer
      %s22 = sadd.s32 1, %s18
    $region7: #{tpu_custom_call.1} parent=1 // loop_footer_branch
      %17 = sbr.rel target = $region3
    $region8: #{tpu_custom_call.1} parent=1 // loop_exit
      _
    %825 = vsyncpa [#allocation4], 1
    %s826 = scalar_lea.sflag [#allocation4], 1
    %827 = vsyncpa %s826, 1
    %828 = vsyncpa [#allocation7], 1
    %s829 = scalar_lea.sflag [#allocation7], 1
    %830 = vsyncpa %s829, 1
    %831 = vsyncpa [#allocation5], 1
    %s832 = scalar_lea.sflag [#allocation5], 1
    %833 = vsyncpa %s832, 1

</llo_original>
